<compile_context>
chip_gen: v7x
topology: tpu7x:2x2x1
jax: 0.10.0
libtpu: 0.0.40
codegen_flags: <defaults>
</compile_context>

<pallas_src>
import functools

import jax
import jax.numpy as jnp
from jax.experimental import pallas as pl
from jax.experimental.pallas import tpu as pltpu

# ---- problem constants (mirroring the PyTorch script) ----
NCONP = 1
GRID_SIZE = 100
XE, XS = 0.6, -0.6
DX = (XE - XS) / GRID_SIZE   # 0.012


def _make_coef_mats():
    """M_r, M_l of shape (NCONP, NCONP) folding the triple-loop coefficients."""
    Lmat = jnp.array([[1.0]], dtype=jnp.float32).reshape(NCONP, NCONP)
    Lam = jnp.array([1.0], dtype=jnp.float32)
    Rmat = jnp.linalg.inv(Lmat)
    # M[k, j] = sum_i coef(i) * L[i, j] * R[k, i]
    m_r = jnp.einsum("i,ij,ki->kj", (Lam - jnp.abs(Lam)), Lmat, Rmat)
    m_l = jnp.einsum("i,ij,ki->kj", (Lam + jnp.abs(Lam)), Lmat, Rmat)
    return m_r.astype(jnp.float32), m_l.astype(jnp.float32)


def _round_up(x, k):
    return ((x + k - 1) // k) * k


def _roe_kernel(u_ref, o_ref, *, c_r, c_l, lg):
    # Block: (tb, nlanes) f32, batch rows on sublanes, spatial on lanes.
    # nlanes = round_up(lg, 128); lanes >= lg (and rows past m in the final
    # partial block) hold unspecified data from the partial-block DMA.
    u_raw = u_ref[...]
    nlanes = u_raw.shape[1]
    col = jax.lax.broadcasted_iota(jnp.int32, (1, nlanes), 1)

    # Zero the out-of-range lanes so garbage (possibly NaN/Inf) can never reach
    # a valid lane via 0 * NaN in the hoisted-coefficient formulation below.
    u = jnp.where(col < lg, u_raw, 0.0)

    # Boundary-aware coefficient rows (masks hoisted off the full blocks):
    #   w_r == 0 at the right edge (dur[lg-1] = 0) and on pad lanes,
    #   w_l == 0 at the left edge  (dul[0]    = 0).
    w_r = jnp.where(col < lg - 1, c_r, 0.0)
    w_l = jnp.where(col > 0, c_l, 0.0)

    # ur[i] = u[i+1 (mod nlanes)],  ul[i] = u[i-1 (mod nlanes)] -- the wrapped
    # elements only land on masked positions.
    ur = pltpu.roll(u, shift=nlanes - 1, axis=1)
    ul = pltpu.roll(u, shift=1, axis=1)

    # c_r = -M_r[0,0]/(2*dx),  c_l = -M_l[0,0]/(2*dx)  (folded in the wrapper)
    o_ref[...] = w_r * (ur - u) + w_l * (u - ul)


def roe_forward(u, m_r, m_l, dx=DX, tb_max=8192):
    """u: (M, nconp, Lg) float32 -> (M, nconp, Lg) float32."""
    m, n, lg = u.shape
    assert n == NCONP == 1, "Pallas fast path assumes nconp == 1 (as in the module)"

    # Fold the coefficient matrices and the -1/(2*dx) factor into two scalars.
    # NOTE: float(...) requires concrete m_r/m_l (true here); pass them via
    # scalar prefetch instead if this ever needs to run under jit with traced
    # coefficient matrices.
    c_r = float(-m_r[0, 0] / (2.0 * dx))
    c_l = float(-m_l[0, 0] / (2.0 * dx))

    u2 = u.reshape(m, lg)                       # metadata-only reshape

    # Lane block: spatial axis stays on lanes, rounded up to 128; the single
    # partial lane block is masked by Pallas (no HBM pad / slice needed).
    lane_block = max(128, _round_up(lg, 128))

    # Batch tile: aim for >= ~4 grid steps (pipelining + v7x megacore split),
    # keep each block >= ~0.5 MiB so per-step overhead amortizes, and cap at
    # tb_max (8192 rows -> 4 MiB per buffer).
    m8 = _round_up(m, 8)
    tb = _round_up(pl.cdiv(m8, 4), 8)
    tb = max(tb, min(m8, 1024))
    tb = min(tb, tb_max)
    grid = pl.cdiv(m, tb)                       # final partial block is masked

    kernel = functools.partial(_roe_kernel, c_r=c_r, c_l=c_l, lg=lg)

    out = pl.pallas_call(
        kernel,
        out_shape=jax.ShapeDtypeStruct((m, lg), jnp.float32),
        grid_spec=pltpu.PrefetchScalarGridSpec(
            num_scalar_prefetch=0,
            grid=(grid,),
            in_specs=[pl.BlockSpec((tb, lane_block), lambda b: (b, 0))],
            out_specs=pl.BlockSpec((tb, lane_block), lambda b: (b, 0)),
        ),
        compiler_params=pltpu.CompilerParams(
            dimension_semantics=("parallel",),
            # Double-buffered in+out at tb=8192 is 16 MiB; raise the scoped
            # limit so it fits on v5e's 16 MiB default while staying well
            # under v7x's 64 MiB physical VMEM.
            vmem_limit_bytes=48 * 1024 * 1024,
        ),
    )(u2)

    return out.reshape(m, NCONP, lg)


def roe_reference(u, m_r, m_l, dx=DX):
    """Plain-JAX reference matching the PyTorch forward exactly."""
    ul = jnp.concatenate([u[:, :, 0:1], u[:, :, :-1]], axis=2)
    ur = jnp.concatenate([u[:, :, 1:], u[:, :, -1:]], axis=2)
    rur = jnp.einsum("kj,mjl->mkl", m_r, ur - u)
    rul = jnp.einsum("kj,mjl->mkl", m_l, u - ul)
    return -(rur + rul) / (2.0 * dx)


if __name__ == "__main__":
    key = jax.random.PRNGKey(0)
    # Real spatial size (GRID_SIZE = 100) and a tiny batch: exercises both the
    # partial lane block (100 < 128) and the partial row block (m < tb).
    batch, n, lg = 4, NCONP, GRID_SIZE
    u = jax.random.normal(key, (batch, n, lg), dtype=jnp.float32)

    m_r, m_l = _make_coef_mats()

    out = jax.block_until_ready(roe_forward(u, m_r, m_l))
    ref = roe_reference(u, m_r, m_l)

    assert out.shape == (batch, n, lg)
    assert jnp.allclose(out, ref, atol=1e-5, rtol=1e-5), "mismatch vs reference"

    print("KERNEL_OK")
</pallas_src>

<mosaic_0001>
module attributes {stable_mosaic.version = 11 : i64} {
  func.func @_roe_kernel(%arg0: i32, %arg1: memref<8x128xf32, #tpu.memory_space<vmem>>, %arg2: memref<8x128xf32, #tpu.memory_space<vmem>>) attributes {dimension_semantics = [#tpu.dimension_semantics<parallel>], iteration_bounds = array<i64: 1>, scalar_prefetch = 0 : i64, scratch_operands = 0 : i64, tpu.core_type = #tpu.core_type<tc>, window_params = [{transform_indices = @transform_0, window_bounds = array<i64: 8, 128>}, {transform_indices = @transform_1, window_bounds = array<i64: 8, 128>}]} {
    %c0 = arith.constant 0 : index
    %c0_0 = arith.constant 0 : index
    %0 = vector.load %arg1[%c0, %c0_0] : memref<8x128xf32, #tpu.memory_space<vmem>>, vector<8x128xf32>
    %1 = tpu.iota {dimensions = array<i32: 1>} : vector<1x128xi32>
    %c100_i32 = arith.constant 100 : i32
    %2 = vector.broadcast %c100_i32 : i32 to vector<1x128xi32>
    %3 = arith.cmpi slt, %1, %2 : vector<1x128xi32>
    %cst = arith.constant 0.000000e+00 : f32
    %4 = vector.shape_cast %3 : vector<1x128xi1> to vector<1x128xi1>
    %5 = vector.broadcast %4 : vector<1x128xi1> to vector<8x128xi1>
    %6 = vector.broadcast %cst : f32 to vector<8x128xf32>
    %7 = arith.select %5, %0, %6 : vector<8x128xi1>, vector<8x128xf32>
    %c99_i32 = arith.constant 99 : i32
    %8 = vector.broadcast %c99_i32 : i32 to vector<1x128xi32>
    %9 = arith.cmpi slt, %1, %8 : vector<1x128xi32>
    %cst_1 = arith.constant -0.000000e+00 : f32
    %cst_2 = arith.constant 0.000000e+00 : f32
    %10 = vector.broadcast %cst_1 : f32 to vector<1x128xf32>
    %11 = vector.broadcast %cst_2 : f32 to vector<1x128xf32>
    %12 = arith.select %9, %10, %11 : vector<1x128xi1>, vector<1x128xf32>
    %c0_i32 = arith.constant 0 : i32
    %13 = vector.broadcast %c0_i32 : i32 to vector<1x128xi32>
    %14 = arith.cmpi sgt, %1, %13 : vector<1x128xi32>
    %cst_3 = arith.constant -83.3333359 : f32
    %cst_4 = arith.constant 0.000000e+00 : f32
    %15 = vector.broadcast %cst_3 : f32 to vector<1x128xf32>
    %16 = vector.broadcast %cst_4 : f32 to vector<1x128xf32>
    %17 = arith.select %14, %15, %16 : vector<1x128xi1>, vector<1x128xf32>
    %c127_i32 = arith.constant 127 : i32
    %18 = tpu.dynamic_rotate %7 by %c127_i32 dim 1 : vector<8x128xf32>, i32 -> vector<8x128xf32>
    %c1_i32 = arith.constant 1 : i32
    %19 = tpu.dynamic_rotate %7 by %c1_i32 dim 1 : vector<8x128xf32>, i32 -> vector<8x128xf32>
    %20 = arith.subf %18, %7 : vector<8x128xf32>
    %21 = vector.broadcast %12 : vector<1x128xf32> to vector<8x128xf32>
    %22 = arith.mulf %21, %20 : vector<8x128xf32>
    %23 = arith.subf %7, %19 : vector<8x128xf32>
    %24 = vector.broadcast %17 : vector<1x128xf32> to vector<8x128xf32>
    %25 = arith.mulf %24, %23 : vector<8x128xf32>
    %26 = arith.addf %22, %25 : vector<8x128xf32>
    %c0_5 = arith.constant 0 : index
    %c0_6 = arith.constant 0 : index
    %27 = vector.load %arg2[%c0_5, %c0_6] : memref<8x128xf32, #tpu.memory_space<vmem>>, vector<8x128xf32>
    tpu.vector_store %arg2[%c0_5, %c0_6], %26 {strides = array<i32>} : memref<8x128xf32, #tpu.memory_space<vmem>>, vector<8x128xf32>,
    return
  }
  func.func @transform_0(%arg0: i32) -> (i32, i32) {
    %c0_i32 = arith.constant 0 : i32
    %c0_i32_0 = arith.constant 0 : i32
    return %arg0, %c0_i32 : i32, i32
  }
  func.func @transform_1(%arg0: i32) -> (i32, i32) {
    %c0_i32 = arith.constant 0 : i32
    %c0_i32_0 = arith.constant 0 : i32
    return %arg0, %c0_i32 : i32, i32
  }
}

</mosaic_0001>

<llo_original>
// kernel: tpu_custom_call.1
$region0: #{tpu_custom_call.1}
  #allocation0 [shape = 'u32[]', space=smem, size = 0x4, offset = 0x4, fixed_abs, tag = 'smem constant byte address 0x4 - core index']
  #allocation1 [shape = 'u32[144,128]{1,0:T(1,128)}', space=vmem, size = 0x12000, scoped, tag = 'internal scratch']
  %s0 = inlined_call_operand.hbm [shape: f32[4,100], index: 0, kind: input, shape index: {}]
  %s1 = inlined_call_operand.hbm [shape: f32[4,100], index: 1, kind: output, shape index: {}]
  %s2 = sld [smem:[#allocation0]]
  $region18: #{tpu_custom_call.1} parent=0
    _
  %s4 = ssub.s32 1, %s2
  %s5 = scalar_select 0, %s4, %s2
  $region1: #{tpu_custom_call.1} parent=0
    #allocation2 [shape = 'u8[4096]{0}', space=vmem, size = 0x1000, scoped, tag = 'input window, operand 0, single buffered']
    #allocation3 [shape = 's32[1]{0}', space=sflag, size = 0x4, scoped, tag = 'scoped memory for tpu_custom_call.1']
    #allocation4 [shape = 's32[1]{0}', space=sflag, size = 0x4, scoped, tag = 'scoped memory for tpu_custom_call.1']
    #allocation5 [shape = 'u8[4096]{0}', space=vmem, size = 0x1000, scoped, tag = 'output window, operand 0, single buffered']
    %6 = vsyncpa [#allocation3], 0
    %7 = vsyncpa [#allocation4], 0
    // Predicated region
    $region2: #{tpu_custom_call.1} parent=1 // pred_check
      _
    $region3: #{tpu_custom_call.1} parent=1 // pred_check_branch
      %9 = sbr.rel (0) target = $region5
    $region4: #{tpu_custom_call.1} parent=1 // pred_region
      %s11 = ssub.s32 128, 64
      %12 = vsyncadd [#allocation3], %s11
      %s13 = sshll.u32 [#allocation2], 4
      %s14 = int_to_ptr.vmem [resolvable:$true] %s13
      %19 = dma.hbm_to_vmem [thread:$0]  %s0, 64, %s14, [#allocation3], 64, 64, 4
    $region5: #{tpu_custom_call.1} parent=1 // pred_fallthru
      _
    // Predicated region
    $region6: #{tpu_custom_call.1} parent=1 // pred_check
      _
    $region7: #{tpu_custom_call.1} parent=1 // pred_check_branch
      %21 = sbr.rel (0) target = $region9
    $region8: #{tpu_custom_call.1} parent=1 // pred_region
      %22 = dma.done [#allocation3], 128
    $region9: #{tpu_custom_call.1} parent=1 // pred_fallthru
      _
    %v23 = vld [vmem:[#allocation2] sm:$0xff]
    %v24 = vlaneseq
    %v25 = vand.u32 %v24, 127
    %vm26 = vcmp.lt.s32.totalorder %v25, 100
    %v27 = vsel %vm26, 1, 0
    %vm28 = vcmp.eq.s32.totalorder %v27, 1
    %v29 = vsel %vm28, %v23, 0.0
    %vm30 = vcmp.lt.s32.totalorder %v25, 99
    %v31 = vsel %vm30, -0.0, 0.0
    %vm32 = vcmp.gt.s32.totalorder %v25, 0
    %v33 = vsel %vm32, -83.333336, 0.0
    %34 = vrot.lane.b32.xlu0 %v29, 127
    %v35 = vpop.permute.xlu0 %34
    %36 = vrot.lane.b32.xlu0 %v29, 1
    %v37 = vpop.permute.xlu0 %36
    %v38 = vsub.f32 %v35, %v29
    %v39 = vmul.f32 %v31, %v38
    %v40 = vsub.f32 %v29, %v37
    %v41 = vmul.f32 %v33, %v40
    %v42 = vadd.f32 %v39, %v41
    %43 = vst [vmem:[#allocation5] sm:$0xff] %v42
    // Predicated region
    $region10: #{tpu_custom_call.1} parent=1 // pred_check
      _
    $region11: #{tpu_custom_call.1} parent=1 // pred_check_branch
      %45 = sbr.rel (0) target = $region13
    $region12: #{tpu_custom_call.1} parent=1 // pred_region
      %s47 = ssub.s32 128, 64
      %48 = vsyncadd [#allocation4], %s47
      %s49 = sshll.u32 [#allocation5], 4
      %s50 = int_to_ptr.vmem [resolvable:$true] %s49
      %55 = dma.vmem_to_hbm [thread:$0]  %s50, 64, %s1, [#allocation4], 64, 64, 4
    $region13: #{tpu_custom_call.1} parent=1 // pred_fallthru
      _
    // Predicated region
    $region14: #{tpu_custom_call.1} parent=1 // pred_check
      _
    $region15: #{tpu_custom_call.1} parent=1 // pred_check_branch
      %57 = sbr.rel (0) target = $region17
    $region16: #{tpu_custom_call.1} parent=1 // pred_region
      %58 = dma.done [#allocation4], 128
    $region17: #{tpu_custom_call.1} parent=1 // pred_fallthru
      _
    %59 = vsyncpa [#allocation3], 1
    %60 = vsyncpa [#allocation4], 1

</llo_original>
